<compile_context>
chip_gen: v7x
topology: tpu7x:2x2x1
jax: 0.10.0
libtpu: 0.0.40
codegen_flags: <defaults>
</compile_context>

<pallas_src>
from collections import OrderedDict

import jax
import jax.numpy as jnp
from jax.experimental import pallas as pl
from jax.experimental.pallas import tpu as pltpu


# --------------------------------------------------------------------------
# helpers
# --------------------------------------------------------------------------
def _round_up(x, m):
    return ((x + m - 1) // m) * m


def _pad2d(a, rows, cols):
    return jnp.pad(a, ((0, rows - a.shape[0]), (0, cols - a.shape[1])))


# --------------------------------------------------------------------------
# Pallas kernels
# --------------------------------------------------------------------------
def _make_fused_head_kernel(batch, num_classes, m_pad, n_pad):
    """Fused train head: x@W + b, squared-error vs in-kernel one-hot,
    scalar mean loss + scalar accuracy. K axis is the grid (reduction)."""
    inv_loss = 1.0 / float(batch * num_classes)
    inv_batch = 1.0 / float(batch)

    def kernel(x_ref, w_ref, b_ref, lbl_ref, logits_ref, loss_ref, acc_ref,
               acc_scratch):
        k = pl.program_id(0)

        @pl.when(k == 0)
        def _init():
            acc_scratch[...] = jnp.zeros_like(acc_scratch)

        # bf16 operands, f32 accumulation on the MXU.
        acc_scratch[...] += jnp.dot(x_ref[...], w_ref[...],
                                    preferred_element_type=jnp.float32)

        @pl.when(k == pl.num_programs(0) - 1)
        def _finalize():
            logits = acc_scratch[...] + b_ref[...]            # (m_pad, n_pad) f32
            logits_ref[...] = logits                          # lane-dense store

            lbl = lbl_ref[...]                                # (m_pad, 1) int32
            col_ids = jax.lax.broadcasted_iota(jnp.int32, (m_pad, n_pad), 1)
            row_ids = jax.lax.broadcasted_iota(jnp.int32, (m_pad, n_pad), 0)
            valid = jnp.logical_and(row_ids < batch, col_ids < num_classes)

            # squared error vs. one-hot built in-kernel (no HBM one-hot).
            target = (col_ids == lbl).astype(jnp.float32)
            diff = logits - target
            sq = jnp.where(valid, diff * diff, 0.0)
            loss_vec = jnp.sum(jnp.sum(sq, axis=1, keepdims=True),
                               axis=0, keepdims=True) * inv_loss
            loss_ref[0, 0] = loss_vec[0, 0]

            # accuracy: first-argmax over valid class lanes == label.
            masked = jnp.where(col_ids < num_classes, logits, -jnp.inf)
            row_max = jnp.max(masked, axis=1, keepdims=True)
            pred = jnp.min(jnp.where(masked == row_max, col_ids, n_pad),
                           axis=1, keepdims=True)             # (m_pad, 1)
            row_col = jax.lax.broadcasted_iota(jnp.int32, (m_pad, 1), 0)
            correct = jnp.logical_and(pred == lbl,
                                      row_col < batch).astype(jnp.float32)
            acc_vec = jnp.sum(correct, axis=0, keepdims=True) * inv_batch
            acc_ref[0, 0] = acc_vec[0, 0]

    return kernel


def _linear_kernel(x_ref, w_ref, b_ref, o_ref, acc_ref):
    """Inference head: K-tiled bf16 matmul with f32 accumulator, bias add."""
    k = pl.program_id(0)

    @pl.when(k == 0)
    def _init():
        acc_ref[...] = jnp.zeros_like(acc_ref)

    acc_ref[...] += jnp.dot(x_ref[...], w_ref[...],
                            preferred_element_type=jnp.float32)

    @pl.when(k == pl.num_programs(0) - 1)
    def _finalize():
        o_ref[...] = acc_ref[...] + b_ref[...]


def _make_mean_kernel(inv_count):
    """Lane-dense tiled mean: accumulate block sums, emit scalar to SMEM."""
    def kernel(x_ref, o_ref, acc_ref):
        i = pl.program_id(0)

        @pl.when(i == 0)
        def _init():
            acc_ref[...] = jnp.zeros_like(acc_ref)

        blk = jnp.sum(jnp.sum(x_ref[...], axis=0, keepdims=True),
                      axis=1, keepdims=True)                  # (1, 1)
        acc_ref[...] += blk

        @pl.when(i == pl.num_programs(0) - 1)
        def _finalize():
            o_ref[0, 0] = (acc_ref[...] * inv_count)[0, 0]

    return kernel


# --------------------------------------------------------------------------
# Pallas wrappers
# --------------------------------------------------------------------------
_K_TILE = 256
_LANE = 128
_ROW_PAD = 16     # bf16-friendly sublane padding of the batch dimension


def pallas_train_head(x2d, w_pad, b_pad, labels, *, batch, num_classes,
                      k_tile=_K_TILE):
    k_pad, n_pad = w_pad.shape
    m_pad = _round_up(max(batch, _ROW_PAD), _ROW_PAD)

    x_p = _pad2d(x2d.astype(jnp.float32), m_pad, k_pad).astype(jnp.bfloat16)
    lbl = jnp.full((m_pad, 1), -1, jnp.int32).at[:batch, 0].set(
        labels.astype(jnp.int32))

    kernel = _make_fused_head_kernel(batch, num_classes, m_pad, n_pad)
    logits_p, loss, acc = pl.pallas_call(
        kernel,
        grid=(k_pad // k_tile,),
        in_specs=[
            pl.BlockSpec((m_pad, k_tile), lambda k: (0, k)),
            pl.BlockSpec((k_tile, n_pad), lambda k: (k, 0)),
            pl.BlockSpec((1, n_pad), lambda k: (0, 0)),
            pl.BlockSpec((m_pad, 1), lambda k: (0, 0)),
        ],
        out_specs=(
            pl.BlockSpec((m_pad, n_pad), lambda k: (0, 0)),
            pl.BlockSpec(memory_space=pltpu.MemorySpace.SMEM),
            pl.BlockSpec(memory_space=pltpu.MemorySpace.SMEM),
        ),
        out_shape=(
            jax.ShapeDtypeStruct((m_pad, n_pad), jnp.float32),
            jax.ShapeDtypeStruct((1, 1), jnp.float32),
            jax.ShapeDtypeStruct((1, 1), jnp.float32),
        ),
        scratch_shapes=[pltpu.VMEM((m_pad, n_pad), jnp.float32)],
        compiler_params=pltpu.CompilerParams(
            dimension_semantics=("arbitrary",)),
    )(x_p, w_pad, b_pad, lbl)
    return logits_p[:batch, :num_classes], loss[0, 0], acc[0, 0]


def pallas_linear(x2d, w_pad, b_pad, *, batch, num_classes, k_tile=_K_TILE):
    k_pad, n_pad = w_pad.shape
    m_pad = _round_up(max(batch, _ROW_PAD), _ROW_PAD)
    x_p = _pad2d(x2d.astype(jnp.float32), m_pad, k_pad).astype(jnp.bfloat16)

    logits_p = pl.pallas_call(
        _linear_kernel,
        grid=(k_pad // k_tile,),
        in_specs=[
            pl.BlockSpec((m_pad, k_tile), lambda k: (0, k)),
            pl.BlockSpec((k_tile, n_pad), lambda k: (k, 0)),
            pl.BlockSpec((1, n_pad), lambda k: (0, 0)),
        ],
        out_specs=pl.BlockSpec((m_pad, n_pad), lambda k: (0, 0)),
        out_shape=jax.ShapeDtypeStruct((m_pad, n_pad), jnp.float32),
        scratch_shapes=[pltpu.VMEM((m_pad, n_pad), jnp.float32)],
        compiler_params=pltpu.CompilerParams(
            dimension_semantics=("arbitrary",)),
    )(x_p, w_pad, b_pad)
    return logits_p[:batch, :num_classes]


def pallas_mean(x, *, rows_per_block=256):
    """Mean of an arbitrary tensor: lane-dense (rows,128) tiling, zero-padded
    (exact sum), grid-accumulated, scalar SMEM output, divide by true count."""
    xf = jnp.asarray(x, jnp.float32).reshape(-1)
    n = int(xf.size)
    rows = pl.cdiv(n, _LANE)
    rows_per_block = min(rows_per_block, _round_up(rows, 8))
    rows_pad = _round_up(rows, rows_per_block)
    padded = jnp.zeros((rows_pad * _LANE,), jnp.float32).at[:n].set(xf)
    padded = padded.reshape(rows_pad, _LANE)

    out = pl.pallas_call(
        _make_mean_kernel(1.0 / float(n)),
        grid=(rows_pad // rows_per_block,),
        in_specs=[pl.BlockSpec((rows_per_block, _LANE), lambda i: (i, 0))],
        out_specs=pl.BlockSpec(memory_space=pltpu.MemorySpace.SMEM),
        out_shape=jax.ShapeDtypeStruct((1, 1), jnp.float32),
        scratch_shapes=[pltpu.VMEM((1, 1), jnp.float32)],
        compiler_params=pltpu.CompilerParams(
            dimension_semantics=("arbitrary",)),
    )(padded)
    return out[0, 0]


def _mean_value(v):
    v = jnp.asarray(v)
    if v.size == 1:
        return v.reshape(())          # already reduced inside the fused kernel
    return pallas_mean(v)


# --------------------------------------------------------------------------
# BaseRecognizor (JAX / Pallas version)
# --------------------------------------------------------------------------
class BaseRecognizorPallas:
    """Mirrors davarocr BaseRecognizor's forward / forward_test / train_step
    control flow, with Pallas kernels for the numeric hot paths."""

    K_TILE = _K_TILE

    def __init__(self, in_features, num_classes, key):
        self.fp16_enabled = False
        self.num_classes = num_classes
        self.in_features = in_features
        kw, kb = jax.random.split(key)
        # TODO(synk): base class leaves the recognition head abstract; a single
        # deterministic linear head stands in so forward_train/simple_test run.
        self.weight = jax.random.normal(
            kw, (in_features, num_classes), jnp.float32) * 0.02
        self.bias = jax.random.normal(kb, (1, num_classes), jnp.float32) * 0.01
        # Padded / bf16 copies used by the TPU kernels (lane-dense N, K tiled).
        self.n_pad = _round_up(max(num_classes, _LANE), _LANE)
        self.k_pad = _round_up(in_features, self.K_TILE)
        self.w_pad = _pad2d(self.weight, self.k_pad, self.n_pad).astype(
            jnp.bfloat16)
        self.b_pad = _pad2d(self.bias, 1, self.n_pad)   # f32

    # ---- properties mirroring the PyTorch base ---------------------------
    @property
    def with_transformation(self):
        return hasattr(self, "transformation") and self.transformation is not None

    @property
    def with_converter(self):
        return hasattr(self, "converter") and self.converter is not None

    # ---- "abstract" methods, minimally concretized ------------------------
    def forward_train(self, imgs, gt_texts, img_meta=None, **kwargs):
        B = imgs.shape[0]
        x2d = imgs.reshape(B, -1)
        _logits, loss_ce, acc = pallas_train_head(
            x2d, self.w_pad, self.b_pad, gt_texts,
            batch=B, num_classes=self.num_classes, k_tile=self.K_TILE)
        return dict(loss_ce=loss_ce, acc=acc)

    def simple_test(self, imgs, gt_texts=None, img_meta=None, **kwargs):
        B = imgs.shape[0]
        x2d = imgs.reshape(B, -1)
        logits = pallas_linear(
            x2d, self.w_pad, self.b_pad,
            batch=B, num_classes=self.num_classes, k_tile=self.K_TILE)
        return dict(logits=logits)

    def aug_test(self, imgs, gt_texts, **kwargs):
        # All aug views stacked into ONE kernel call (one weight DMA/launch).
        num_augs = len(imgs)
        B = imgs[0].shape[0]
        stacked = jnp.concatenate(
            [im.reshape(im.shape[0], -1) for im in imgs], axis=0)
        logits = pallas_linear(
            stacked, self.w_pad, self.b_pad,
            batch=num_augs * B, num_classes=self.num_classes,
            k_tile=self.K_TILE)
        logits = logits.reshape(num_augs, B, self.num_classes).mean(axis=0)
        return dict(logits=logits)

    def init_weights(self, pretrained=None):
        pass  # no checkpoint loading in the synthetic kernel

    # ---- forward dispatch (identical control flow) ------------------------
    def forward_test(self, imgs, gt_texts=None, img_meta=None, **kwargs):
        if isinstance(imgs, jnp.ndarray):
            imgs = [imgs]
        num_augs = len(imgs)
        if num_augs == 1:
            return self.simple_test(
                imgs[0], gt_texts[0] if gt_texts is not None else None, **kwargs)
        return self.aug_test(imgs, gt_texts if gt_texts is not None else None,
                             **kwargs)

    def forward(self, img, gt_text=None, img_meta=None, return_loss=True,
                **kwargs):
        if return_loss:
            return self.forward_train(img, gt_text, **kwargs)
        return self.forward_test(img, gt_texts=gt_text, **kwargs)

    __call__ = forward

    # ---- loss parsing ------------------------------------------------------
    def _parse_losses(self, losses):
        log_vars = OrderedDict()
        for loss_name, loss_value in losses.items():
            if isinstance(loss_value, jnp.ndarray):
                log_vars[loss_name] = _mean_value(loss_value)
            elif isinstance(loss_value, (list, tuple)):
                log_vars[loss_name] = sum(_mean_value(v) for v in loss_value)
            else:
                raise TypeError(f"{loss_name} is not a tensor or list of tensors")
        loss = sum(v for k, v in log_vars.items() if "loss" in k)
        log_vars["loss"] = loss
        # TODO(synk): torch.distributed all_reduce / world-size averaging has
        # no single-host Pallas equivalent; values are reported as-is.
        host_vals = jax.device_get(dict(log_vars))   # ONE device->host sync
        log_vars = OrderedDict((k, float(host_vals[k])) for k in log_vars)
        return loss, log_vars

    def train_step(self, data, optimizer):
        losses = self(**data)
        loss, log_vars = self._parse_losses(losses)
        return dict(loss=loss, log_vars=log_vars, num_samples=len(data["img"]))

    def val_step(self, data, optimizer):
        losses = self(**data)
        loss, log_vars = self._parse_losses(losses)
        return dict(loss=loss, log_vars=log_vars, num_samples=len(data["img"]))


# --------------------------------------------------------------------------
if __name__ == "__main__":
    key = jax.random.PRNGKey(0)
    k_img, k_lbl, k_param, k_mean = jax.random.split(key, 4)

    B, C, H, W = 2, 4, 16, 16
    num_classes = 32
    img = jax.random.normal(k_img, (B, C, H, W), jnp.float32)   # NCHW
    gt_text = jax.random.randint(k_lbl, (B,), 0, num_classes)

    model = BaseRecognizorPallas(in_features=C * H * W,
                                 num_classes=num_classes, key=k_param)

    # training path (forward -> forward_train -> _parse_losses)
    outputs = model.train_step(dict(img=img, gt_text=gt_text), optimizer=None)
    jax.block_until_ready(outputs["loss"])
    assert outputs["num_samples"] == B
    assert "loss" in outputs["log_vars"] and "loss_ce" in outputs["log_vars"]
    assert 0.0 <= outputs["log_vars"]["acc"] <= 1.0

    # inference path (forward -> forward_test -> simple_test)
    res = model.forward(img, gt_text=None, return_loss=False)
    jax.block_until_ready(res["logits"])
    assert res["logits"].shape == (B, num_classes)

    # reference check (same bf16-rounded operands, f32 math)
    xb = img.reshape(B, -1).astype(jnp.bfloat16).astype(jnp.float32)
    wb = model.weight.astype(jnp.bfloat16).astype(jnp.float32)
    ref_logits = xb @ wb + model.bias
    assert jnp.allclose(res["logits"], ref_logits, atol=5e-2, rtol=5e-2)
    onehot = jax.nn.one_hot(gt_text, num_classes, dtype=jnp.float32)
    ref_loss = float(jnp.mean((ref_logits - onehot) ** 2))
    assert abs(outputs["log_vars"]["loss_ce"] - ref_loss) < 1e-2 * max(1.0, ref_loss)

    # aug-test path: one stacked kernel call for both views
    res_aug = model.forward_test([img, img + 0.1], gt_texts=None)
    jax.block_until_ready(res_aug["logits"])
    assert res_aug["logits"].shape == (B, num_classes)

    # lane-dense tiled pallas_mean sanity check (non-aligned shape)
    v = jax.random.normal(k_mean, (37, 130), jnp.float32)
    pm = pallas_mean(v)
    jax.block_until_ready(pm)
    assert abs(float(pm) - float(jnp.mean(v))) < 1e-4

    print("KERNEL_OK")
</pallas_src>

<mosaic_0001>
module attributes {stable_mosaic.version = 11 : i64} {
  func.func @kernel(%arg0: i32, %arg1: memref<16x256xbf16, #tpu.memory_space<vmem>>, %arg2: memref<256x128xbf16, #tpu.memory_space<vmem>>, %arg3: memref<1x128xf32, #tpu.memory_space<vmem>>, %arg4: memref<16x1xi32, #tpu.memory_space<vmem>>, %arg5: memref<16x128xf32, #tpu.memory_space<vmem>>, %arg6: memref<1x1xf32, #tpu.memory_space<smem>>, %arg7: memref<1x1xf32, #tpu.memory_space<smem>>, %arg8: memref<16x128xf32, #tpu.memory_space<vmem>>) attributes {dimension_semantics = [#tpu.dimension_semantics<arbitrary>], iteration_bounds = array<i64: 4>, scalar_prefetch = 0 : i64, scratch_operands = 1 : i64, tpu.core_type = #tpu.core_type<tc>, window_params = [{transform_indices = @transform_0, window_bounds = array<i64: 16, 256>}, {transform_indices = @transform_1, window_bounds = array<i64: 256, 128>}, {pipeline_mode = #tpu.pipeline_mode<synchronous>, transform_indices = @transform_2, window_bounds = array<i64: 1, 128>}, {pipeline_mode = #tpu.pipeline_mode<synchronous>, transform_indices = @transform_3, window_bounds = array<i64: 16, 1>}, {pipeline_mode = #tpu.pipeline_mode<synchronous>, transform_indices = @transform_4, window_bounds = array<i64: 16, 128>}, {transform_indices = @transform_5, window_bounds = array<i64: 1, 1>}, {transform_indices = @transform_6, window_bounds = array<i64: 1, 1>}]} {
    %c0_i32 = arith.constant 0 : i32
    %0 = arith.cmpi eq, %arg0, %c0_i32 : i32
    %1 = arith.extui %0 : i1 to i32
    %c0_i32_0 = arith.constant 0 : i32
    %2 = arith.cmpi ne, %1, %c0_i32_0 : i32
    scf.if %2 {
      %cst_9 = arith.constant 0.000000e+00 : f32
      %12 = vector.broadcast %cst_9 : f32 to vector<16x128xf32>
      %c0_10 = arith.constant 0 : index
      %c0_11 = arith.constant 0 : index
      %13 = vector.load %arg8[%c0_10, %c0_11] : memref<16x128xf32, #tpu.memory_space<vmem>>, vector<16x128xf32>
      tpu.vector_store %arg8[%c0_10, %c0_11], %12 {strides = array<i32>} : memref<16x128xf32, #tpu.memory_space<vmem>>, vector<16x128xf32>,
    } else {
    }
    %c0 = arith.constant 0 : index
    %c0_1 = arith.constant 0 : index
    %3 = vector.load %arg8[%c0, %c0_1] : memref<16x128xf32, #tpu.memory_space<vmem>>, vector<16x128xf32>
    %c0_2 = arith.constant 0 : index
    %c0_3 = arith.constant 0 : index
    %4 = vector.load %arg1[%c0_2, %c0_3] : memref<16x256xbf16, #tpu.memory_space<vmem>>, vector<16x256xbf16>
    %c0_4 = arith.constant 0 : index
    %c0_5 = arith.constant 0 : index
    %5 = vector.load %arg2[%c0_4, %c0_5] : memref<256x128xbf16, #tpu.memory_space<vmem>>, vector<256x128xbf16>
    %cst = arith.constant dense<0.000000e+00> : vector<16x128xf32>
    %6 = tpu.matmul %4, %5, %cst {dimension_numbers = #tpu.dot_dimension_numbers<[1], [0], [0], [1], [0, 0, 1, 1], [], []>} : vector<16x256xbf16>, vector<256x128xbf16>, vector<16x128xf32> -> vector<16x128xf32>
    %7 = arith.addf %3, %6 : vector<16x128xf32>
    %c0_6 = arith.constant 0 : index
    %c0_7 = arith.constant 0 : index
    %8 = vector.load %arg8[%c0_6, %c0_7] : memref<16x128xf32, #tpu.memory_space<vmem>>, vector<16x128xf32>
    tpu.vector_store %arg8[%c0_6, %c0_7], %7 {strides = array<i32>} : memref<16x128xf32, #tpu.memory_space<vmem>>, vector<16x128xf32>,
    %c3_i32 = arith.constant 3 : i32
    %9 = arith.cmpi eq, %arg0, %c3_i32 : i32
    %10 = arith.extui %9 : i1 to i32
    %c0_i32_8 = arith.constant 0 : i32
    %11 = arith.cmpi ne, %10, %c0_i32_8 : i32
    scf.if %11 {
      %c0_9 = arith.constant 0 : index
      %c0_10 = arith.constant 0 : index
      %12 = vector.load %arg8[%c0_9, %c0_10] : memref<16x128xf32, #tpu.memory_space<vmem>>, vector<16x128xf32>
      %c0_11 = arith.constant 0 : index
      %c0_12 = arith.constant 0 : index
      %13 = vector.load %arg3[%c0_11, %c0_12] : memref<1x128xf32, #tpu.memory_space<vmem>>, vector<1x128xf32>
      %14 = vector.broadcast %13 : vector<1x128xf32> to vector<16x128xf32>
      %15 = arith.addf %12, %14 : vector<16x128xf32>
      %c0_13 = arith.constant 0 : index
      %c0_14 = arith.constant 0 : index
      %16 = vector.load %arg5[%c0_13, %c0_14] : memref<16x128xf32, #tpu.memory_space<vmem>>, vector<16x128xf32>
      tpu.vector_store %arg5[%c0_13, %c0_14], %15 {strides = array<i32>} : memref<16x128xf32, #tpu.memory_space<vmem>>, vector<16x128xf32>,
      %c0_15 = arith.constant 0 : index
      %c0_16 = arith.constant 0 : index
      %17 = vector.load %arg4[%c0_15, %c0_16] : memref<16x1xi32, #tpu.memory_space<vmem>>, vector<16x1xi32>
      %18 = tpu.iota {dimensions = array<i32: 1>} : vector<16x128xi32>
      %19 = tpu.iota {dimensions = array<i32: 0>} : vector<16x128xi32>
      %c2_i32 = arith.constant 2 : i32
      %20 = vector.broadcast %c2_i32 : i32 to vector<16x128xi32>
      %21 = arith.cmpi slt, %19, %20 : vector<16x128xi32>
      %c32_i32 = arith.constant 32 : i32
      %22 = vector.broadcast %c32_i32 : i32 to vector<16x128xi32>
      %23 = arith.cmpi slt, %18, %22 : vector<16x128xi32>
      %24 = arith.andi %21, %23 : vector<16x128xi1>
      %25 = vector.broadcast %17 : vector<16x1xi32> to vector<16x128xi32>
      %26 = arith.cmpi eq, %18, %25 : vector<16x128xi32>
      %27 = arith.extui %26 : vector<16x128xi1> to vector<16x128xi32>
      %28 = arith.sitofp %27 : vector<16x128xi32> to vector<16x128xf32>
      %29 = arith.subf %15, %28 : vector<16x128xf32>
      %30 = arith.mulf %29, %29 : vector<16x128xf32>
      %cst_17 = arith.constant 0.000000e+00 : f32
      %31 = vector.broadcast %cst_17 : f32 to vector<16x128xf32>
      %32 = arith.select %24, %30, %31 : vector<16x128xi1>, vector<16x128xf32>
      %cst_18 = arith.constant dense<0.000000e+00> : vector<16xf32>
      %33 = vector.multi_reduction <add>, %32, %cst_18 [1] : vector<16x128xf32> to vector<16xf32>
      %34 = vector.shape_cast %33 : vector<16xf32> to vector<16x1xf32>
      %cst_19 = arith.constant dense<0.000000e+00> : vector<1xf32>
      %35 = vector.multi_reduction <add>, %34, %cst_19 [0] : vector<16x1xf32> to vector<1xf32>
      %36 = vector.shape_cast %35 : vector<1xf32> to vector<1x1xf32>
      %cst_20 = arith.constant 1.562500e-02 : f32
      %37 = vector.broadcast %cst_20 : f32 to vector<1x1xf32>
      %38 = arith.mulf %36, %37 : vector<1x1xf32>
      %39 = vector.extract %38[0, 0] : f32 from vector<1x1xf32>
      %c0_21 = arith.constant 0 : index
      %c0_22 = arith.constant 0 : index
      %40 = memref.load %arg6[%c0_21, %c0_22] : memref<1x1xf32, #tpu.memory_space<smem>>
      memref.store %39, %arg6[%c0_21, %c0_22] : memref<1x1xf32, #tpu.memory_space<smem>>
      %c32_i32_23 = arith.constant 32 : i32
      %41 = vector.broadcast %c32_i32_23 : i32 to vector<16x128xi32>
      %42 = arith.cmpi slt, %18, %41 : vector<16x128xi32>
      %cst_24 = arith.constant 0xFF800000 : f32
      %43 = vector.broadcast %cst_24 : f32 to vector<16x128xf32>
      %44 = arith.select %42, %15, %43 : vector<16x128xi1>, vector<16x128xf32>
      %cst_25 = arith.constant dense<0xFF800000> : vector<16xf32>
      %45 = vector.multi_reduction <maximumf>, %44, %cst_25 [1] : vector<16x128xf32> to vector<16xf32>
      %46 = vector.shape_cast %45 : vector<16xf32> to vector<16x1xf32>
      %47 = vector.broadcast %46 : vector<16x1xf32> to vector<16x128xf32>
      %48 = arith.cmpf oeq, %44, %47 : vector<16x128xf32>
      %c128_i32 = arith.constant 128 : i32
      %49 = vector.broadcast %c128_i32 : i32 to vector<16x128xi32>
      %50 = arith.select %48, %18, %49 : vector<16x128xi1>, vector<16x128xi32>
      %cst_26 = arith.constant dense<2147483647> : vector<16xi32>
      %51 = vector.multi_reduction <minsi>, %50, %cst_26 [1] : vector<16x128xi32> to vector<16xi32>
      %52 = vector.shape_cast %51 : vector<16xi32> to vector<16x1xi32>
      %53 = tpu.iota {dimensions = array<i32: 0>} : vector<16x1xi32>
      %54 = arith.cmpi eq, %52, %17 : vector<16x1xi32>
      %c2_i32_27 = arith.constant 2 : i32
      %55 = vector.broadcast %c2_i32_27 : i32 to vector<16x1xi32>
      %56 = arith.cmpi slt, %53, %55 : vector<16x1xi32>
      %57 = arith.andi %54, %56 : vector<16x1xi1>
      %58 = arith.extui %57 : vector<16x1xi1> to vector<16x1xi32>
      %59 = arith.sitofp %58 : vector<16x1xi32> to vector<16x1xf32>
      %cst_28 = arith.constant dense<0.000000e+00> : vector<1xf32>
      %60 = vector.multi_reduction <add>, %59, %cst_28 [0] : vector<16x1xf32> to vector<1xf32>
      %61 = vector.shape_cast %60 : vector<1xf32> to vector<1x1xf32>
      %cst_29 = arith.constant 5.000000e-01 : f32
      %62 = vector.broadcast %cst_29 : f32 to vector<1x1xf32>
      %63 = arith.mulf %61, %62 : vector<1x1xf32>
      %64 = vector.extract %63[0, 0] : f32 from vector<1x1xf32>
      %c0_30 = arith.constant 0 : index
      %c0_31 = arith.constant 0 : index
      %65 = memref.load %arg7[%c0_30, %c0_31] : memref<1x1xf32, #tpu.memory_space<smem>>
      memref.store %64, %arg7[%c0_30, %c0_31] : memref<1x1xf32, #tpu.memory_space<smem>>
    } else {
    }
    return
  }
  func.func @transform_0(%arg0: i32) -> (i32, i32) {
    %c0_i32 = arith.constant 0 : i32
    %c0_i32_0 = arith.constant 0 : i32
    return %c0_i32, %arg0 : i32, i32
  }
  func.func @transform_1(%arg0: i32) -> (i32, i32) {
    %c0_i32 = arith.constant 0 : i32
    %c0_i32_0 = arith.constant 0 : i32
    return %arg0, %c0_i32 : i32, i32
  }
  func.func @transform_2(%arg0: i32) -> (i32, i32) {
    %c0_i32 = arith.constant 0 : i32
    %c0_i32_0 = arith.constant 0 : i32
    %c0_i32_1 = arith.constant 0 : i32
    return %c0_i32, %c0_i32_0 : i32, i32
  }
  func.func @transform_3(%arg0: i32) -> (i32, i32) {
    %c0_i32 = arith.constant 0 : i32
    %c0_i32_0 = arith.constant 0 : i32
    %c0_i32_1 = arith.constant 0 : i32
    return %c0_i32, %c0_i32_0 : i32, i32
  }
  func.func @transform_4(%arg0: i32) -> (i32, i32) {
    %c0_i32 = arith.constant 0 : i32
    %c0_i32_0 = arith.constant 0 : i32
    %c0_i32_1 = arith.constant 0 : i32
    return %c0_i32, %c0_i32_0 : i32, i32
  }
  func.func @transform_5(%arg0: i32) -> (i32, i32) {
    %c0_i32 = arith.constant 0 : i32
    %c0_i32_0 = arith.constant 0 : i32
    %c0_i32_1 = arith.constant 0 : i32
    return %c0_i32, %c0_i32_0 : i32, i32
  }
  func.func @transform_6(%arg0: i32) -> (i32, i32) {
    %c0_i32 = arith.constant 0 : i32
    %c0_i32_0 = arith.constant 0 : i32
    %c0_i32_1 = arith.constant 0 : i32
    return %c0_i32, %c0_i32_0 : i32, i32
  }
}

</mosaic_0001>

<llo_original>
// kernel: tpu_custom_call.1
$region0: #{tpu_custom_call.1}
  #allocation0 [shape = 'u32[]', space=smem, size = 0x4, offset = 0x4, fixed_abs, tag = 'smem constant byte address 0x4 - core index']
  #allocation1 [shape = 'u32[144,128]{1,0:T(1,128)}', space=vmem, size = 0x12000, scoped, tag = 'internal scratch']
  #allocation2 [shape = 'f32[16,128]{1,0:T(8,128)}', space=vmem, size = 0x2000, scoped, tag = 'scratch operand']
  %s0 = inlined_call_operand.hbm [shape: bf16[16,1024], index: 0, kind: input, shape index: {}]
  %s1 = inlined_call_operand.hbm [shape: bf16[1024,128], index: 1, kind: input, shape index: {}]
  %s2 = inlined_call_operand.vmem [shape: f32[1,128], index: 2, kind: input, shape index: {}]
  %s3 = inlined_call_operand.vmem [shape: s32[16,1], index: 3, kind: input, shape index: {}]
  %s4 = inlined_call_operand.hbm [shape: f32[16,128], index: 4, kind: output, shape index: {0}]
  %s5 = inlined_call_operand.hbm [shape: f32[1,1], index: 5, kind: output, shape index: {1}]
  %s6 = inlined_call_operand.hbm [shape: f32[1,1], index: 6, kind: output, shape index: {2}]
  %7 = xla_tuple %s4, %s5, %s6
  %s8 = sld [smem:[#allocation0]]
  $region81: #{tpu_custom_call.1} parent=0
    _
  %s10 = ssub.s32 1, %s8
  %s11 = scalar_select 0, %s10, %s8
  $region1: #{tpu_custom_call.1} parent=0
    #allocation3 [shape = 'u8[16384]{0}', space=vmem, size = 0x4000, scoped, tag = 'input window, operand 0']
    #allocation4 [shape = 's32[2]{0}', space=sflag, size = 0x8, scoped, tag = 'scoped memory for tpu_custom_call.1']
    #allocation5 [shape = 's32[2]{0}', space=sflag, size = 0x8, scoped, tag = 'scoped memory for tpu_custom_call.1']
    #allocation6 [shape = 's32[2]{0}', space=sflag, size = 0x8, scoped, tag = 'scoped memory for tpu_custom_call.1']
    #allocation7 [shape = 'u8[131072]{0}', space=vmem, size = 0x20000, scoped, tag = 'input window, operand 1']
    #allocation8 [shape = 's32[2]{0}', space=sflag, size = 0x8, scoped, tag = 'scoped memory for tpu_custom_call.1']
    #allocation9 [shape = 'u8[8192]{0}', space=vmem, size = 0x2000, scoped, tag = 'output window, operand 0, single buffered']
    #allocation10 [shape = 'u8[512]{0}', space=smem, size = 0x200, scoped, tag = 'output window, operand 1, single buffered']
    #allocation11 [shape = 'u8[512]{0}', space=smem, size = 0x200, scoped, tag = 'output window, operand 2, single buffered']
    #allocation12 [shape = 's32[1]{0}', space=sflag, size = 0x4, scoped, tag = 'scoped memory for tpu_custom_call.1']
    %12 = vsyncpa [#allocation4], 0
    %s13 = scalar_lea.sflag [#allocation4], 1
    %14 = vsyncpa %s13, 0
    %15 = vsyncpa [#allocation8], 0
    %s16 = scalar_lea.sflag [#allocation8], 1
    %17 = vsyncpa %s16, 0
    %18 = vsyncpa [#allocation5], 0
    %19 = vsyncpa [#allocation6], 0
    %20 = vsyncpa [#allocation12], 0
    loop: start=0, step=1, limit=6
    $region2: #{tpu_custom_call.1} parent=1 // loop_pre_header
      _
    $region3: #{tpu_custom_call.1} parent=1 // loop_header
      %s22 = sphi 0, %s26
      %p23 = scmp.ge.s32.totalorder %s22, 6
      %s32 = sphi 0, %s34
      %s35 = sphi 0, %s32
      %s36 = sphi 0, %s35
      %s52 = sphi 0, %s36
      %s58 = sphi 0, %s60
      %s61 = sphi 0, %s58
      %s62 = sphi 0, %s61
      %s78 = sphi 0, %s62
      %s82 = sphi 0, %s82
      %s84 = sphi 0, %s82
      %s85 = sphi 0, %s84
      %s99 = sphi 0, %s85
      %s103 = sphi 0, %s103
      %s105 = sphi 0, %s103
      %s106 = sphi 0, %s105
      %s120 = sphi 0, %s106
      %s124 = sphi 0, %s124
      %s126 = sphi 0, %s124
      %s127 = sphi 0, %s126
      %s141 = sphi 0, %s127
      %s145 = sphi 0, %s145
      %s147 = sphi 0, %s145
      %s148 = sphi 0, %s147
      %s162 = sphi 0, %s148
      %s166 = sphi 0, %s166
      %s168 = sphi 0, %s166
      %s169 = sphi 0, %s168
      %s183 = sphi 0, %s169
    $region4: #{tpu_custom_call.1} parent=1 // loop_header_branch
      %25 = sbr.rel (%p23) target = $region8
    $region5: #{tpu_custom_call.1} parent=1 // loop_body
      %s27 = ssub.s32 %s22, 1
      %s28 = ssub.s32 %s22, 2
      %s29 = sadd.s32 %s22, 1
      %s30 = ssub.s32 %s22, %s29
      %p31 = scmp.eq.s32.totalorder %s30, 0
      %s33 = sadd.s32 %s32, 1
      %s34 = scalar_select %p31, %s32, %s33
      %p37 = pneg %p31
      %p38 = scmp.eq.s32.totalorder %s22, 3
      %p39 = por %p37, %p38
      %p40 = scmp.ne.s32.totalorder %s32, %s35
      %p41 = scmp.eq.s32.totalorder %s22, 0
      %p42 = por %p40, %p41
      %p43 = scmp.ne.s32.totalorder %s32, %s35
      %p44 = scmp.eq.s32.totalorder %s27, 3
      %p45 = por %p43, %p44
      %p46 = scmp.ne.s32.totalorder %s35, %s36
      %p47 = scmp.eq.s32.totalorder %s27, 0
      %p48 = por %p46, %p47
      %p49 = scmp.ne.s32.totalorder %s35, %s36
      %p50 = scmp.eq.s32.totalorder %s28, 3
      %p51 = por %p49, %p50
      %p53 = scmp.ne.s32.totalorder %s36, %s52
      %p54 = scmp.eq.s32.totalorder %s28, 0
      %p55 = por %p53, %p54
      %s56 = ssub.s32 %s22, %s29
      %p57 = scmp.eq.s32.totalorder %s56, 0
      %s59 = sadd.s32 %s58, 1
      %s60 = scalar_select %p57, %s58, %s59
      %p63 = pneg %p57
      %p64 = scmp.eq.s32.totalorder %s22, 3
      %p65 = por %p63, %p64
      %p66 = scmp.ne.s32.totalorder %s58, %s61
      %p67 = scmp.eq.s32.totalorder %s22, 0
      %p68 = por %p66, %p67
      %p69 = scmp.ne.s32.totalorder %s58, %s61
      %p70 = scmp.eq.s32.totalorder %s27, 3
      %p71 = por %p69, %p70
      %p72 = scmp.ne.s32.totalorder %s61, %s62
      %p73 = scmp.eq.s32.totalorder %s27, 0
      %p74 = por %p72, %p73
      %p75 = scmp.ne.s32.totalorder %s61, %s62
      %p76 = scmp.eq.s32.totalorder %s28, 3
      %p77 = por %p75, %p76
      %p79 = scmp.ne.s32.totalorder %s62, %s78
      %p80 = scmp.eq.s32.totalorder %s28, 0
      %p81 = por %p79, %p80
      %s83 = sadd.s32 %s82, 1
      %p86 = scmp.eq.s32.totalorder %s22, 3
      %p87 = scmp.ne.s32.totalorder %s82, %s84
      %p88 = scmp.eq.s32.totalorder %s22, 0
      %p89 = por %p87, %p88
      %p90 = scmp.ne.s32.totalorder %s82, %s84
      %p91 = scmp.eq.s32.totalorder %s27, 3
      %p92 = por %p90, %p91
      %p93 = scmp.ne.s32.totalorder %s84, %s85
      %p94 = scmp.eq.s32.totalorder %s27, 0
      %p95 = por %p93, %p94
      %p96 = scmp.ne.s32.totalorder %s84, %s85
      %p97 = scmp.eq.s32.totalorder %s28, 3
      %p98 = por %p96, %p97
      %p100 = scmp.ne.s32.totalorder %s85, %s99
      %p101 = scmp.eq.s32.totalorder %s28, 0
      %p102 = por %p100, %p101
      %s104 = sadd.s32 %s103, 1
      %p107 = scmp.eq.s32.totalorder %s22, 3
      %p108 = scmp.ne.s32.totalorder %s103, %s105
      %p109 = scmp.eq.s32.totalorder %s22, 0
      %p110 = por %p108, %p109
      %p111 = scmp.ne.s32.totalorder %s103, %s105
      %p112 = scmp.eq.s32.totalorder %s27, 3
      %p113 = por %p111, %p112
      %p114 = scmp.ne.s32.totalorder %s105, %s106
      %p115 = scmp.eq.s32.totalorder %s27, 0
      %p116 = por %p114, %p115
      %p117 = scmp.ne.s32.totalorder %s105, %s106
      %p118 = scmp.eq.s32.totalorder %s28, 3
      %p119 = por %p117, %p118
      %p121 = scmp.ne.s32.totalorder %s106, %s120
      %p122 = scmp.eq.s32.totalorder %s28, 0
      %p123 = por %p121, %p122
      %s125 = sadd.s32 %s124, 1
      %p128 = scmp.eq.s32.totalorder %s22, 3
      %p129 = scmp.ne.s32.totalorder %s124, %s126
      %p130 = scmp.eq.s32.totalorder %s22, 0
      %p131 = por %p129, %p130
      %p132 = scmp.ne.s32.totalorder %s124, %s126
      %p133 = scmp.eq.s32.totalorder %s27, 3
      %p134 = por %p132, %p133
      %p135 = scmp.ne.s32.totalorder %s126, %s127
      %p136 = scmp.eq.s32.totalorder %s27, 0
      %p137 = por %p135, %p136
      %p138 = scmp.ne.s32.totalorder %s126, %s127
      %p139 = scmp.eq.s32.totalorder %s28, 3
      %p140 = por %p138, %p139
      %p142 = scmp.ne.s32.totalorder %s127, %s141
      %p143 = scmp.eq.s32.totalorder %s28, 0
      %p144 = por %p142, %p143
      %s146 = sadd.s32 %s145, 1
      %p149 = scmp.eq.s32.totalorder %s22, 3
      %p150 = scmp.ne.s32.totalorder %s145, %s147
      %p151 = scmp.eq.s32.totalorder %s22, 0
      %p152 = por %p150, %p151
      %p153 = scmp.ne.s32.totalorder %s145, %s147
      %p154 = scmp.eq.s32.totalorder %s27, 3
      %p155 = por %p153, %p154
      %p156 = scmp.ne.s32.totalorder %s147, %s148
      %p157 = scmp.eq.s32.totalorder %s27, 0
      %p158 = por %p156, %p157
      %p159 = scmp.ne.s32.totalorder %s147, %s148
      %p160 = scmp.eq.s32.totalorder %s28, 3
      %p161 = por %p159, %p160
      %p163 = scmp.ne.s32.totalorder %s148, %s162
      %p164 = scmp.eq.s32.totalorder %s28, 0
      %p165 = por %p163, %p164
      %s167 = sadd.s32 %s166, 1
      %p170 = scmp.eq.s32.totalorder %s22, 3
      %p171 = scmp.ne.s32.totalorder %s166, %s168
      %p172 = scmp.eq.s32.totalorder %s22, 0
      %p173 = por %p171, %p172
      %p174 = scmp.ne.s32.totalorder %s166, %s168
      %p175 = scmp.eq.s32.totalorder %s27, 3
      %p176 = por %p174, %p175
      %p177 = scmp.ne.s32.totalorder %s168, %s169
      %p178 = scmp.eq.s32.totalorder %s27, 0
      %p179 = por %p177, %p178
      %p180 = scmp.ne.s32.totalorder %s168, %s169
      %p181 = scmp.eq.s32.totalorder %s28, 3
      %p182 = por %p180, %p181
      %p184 = scmp.ne.s32.totalorder %s169, %s183
      %p185 = scmp.eq.s32.totalorder %s28, 0
      %p186 = por %p184, %p185
      %p187 = scmp.le.s32.totalorder 1, %s22
      %p188 = scmp.lt.s32.totalorder %s22, 5
      %p189 = pnand %p187, %p188
      %p190 = pneg %p189
      // Predicated region
      $region9: #{tpu_custom_call.1} parent=5 // pred_check
        _
      $region10: #{tpu_custom_call.1} parent=5 // pred_check_branch
        %192 = sbr.rel (%p189) target = $region12
      $region11: #{tpu_custom_call.1} parent=5 // pred_region
        %s193 = ssub.s32 %s22, 1
        // Predicated region
        $region13: #{tpu_custom_call.1} parent=11 // pred_check
          %p194 = pneg %p95
        $region14: #{tpu_custom_call.1} parent=11 // pred_check_branch
          %196 = sbr.rel (%p194) target = $region16
        $region15: #{tpu_custom_call.1} parent=11 // pred_region
          _
        $region16: #{tpu_custom_call.1} parent=11 // pred_fallthru
          _
        // Predicated region
        $region17: #{tpu_custom_call.1} parent=11 // pred_check
          %p197 = pneg %p116
        $region18: #{tpu_custom_call.1} parent=11 // pred_check_branch
          %199 = sbr.rel (%p197) target = $region20
        $region19: #{tpu_custom_call.1} parent=11 // pred_region
          _
        $region20: #{tpu_custom_call.1} parent=11 // pred_fallthru
          _
      $region12: #{tpu_custom_call.1} parent=5 // pred_fallthru
        _
      %p200 = scmp.lt.s32.totalorder %s22, 4
      // Predicated region
      $region21: #{tpu_custom_call.1} parent=5 // pred_check
        %p201 = pneg %p200
      $region22: #{tpu_custom_call.1} parent=5 // pred_check_branch
        %203 = sbr.rel (%p201) target = $region24
      $region23: #{tpu_custom_call.1} parent=5 // pred_region
        // Predicated region
        $region25: #{tpu_custom_call.1} parent=23 // pred_check
          %p204 = pneg %p42
        $region26: #{tpu_custom_call.1} parent=23 // pred_check_branch
          %206 = sbr.rel (%p204) target = $region28
        $region27: #{tpu_custom_call.1} parent=23 // pred_region
          %s207 = sand.u32 %s32, 1
          %s208 = scalar_lea.sflag [#allocation4], %s207
          %s209 = sand.u32 %s32, 1
          %s210 = smul.addr %s209, 16
          %s211 = scalar_lea.vmem [#allocation3], %s210
          %s212 = smul.u32 2, %s22
          %s214 = ssub.s32 256, 256
          %215 = vsyncadd %s208, %s214
          %s216 = smul.addr %s212, 64
          %s217 = scalar_lea.hbm %s0, %s216
          %s218 = sshll.u32 %s211, 4
          %s219 = int_to_ptr.vmem [resolvable:$true] %s218
          %224 = dma.hbm_to_vmem [thread:$0]  %s217, 256, %s219, %s208, 512, 128, 8
        $region28: #{tpu_custom_call.1} parent=23 // pred_fallthru
          _
        // Predicated region
        $region29: #{tpu_custom_call.1} parent=23 // pred_check
          %p225 = pneg %p68
        $region30: #{tpu_custom_call.1} parent=23 // pred_check_branch
          %227 = sbr.rel (%p225) target = $region32
        $region31: #{tpu_custom_call.1} parent=23 // pred_region
          %s228 = sand.u32 %s58, 1
          %s229 = scalar_lea.sflag [#allocation8], %s228
          %s230 = sand.u32 %s58, 1
          %s231 = smul.addr %s230, 128
          %s232 = scalar_lea.vmem [#allocation7], %s231
          %s233 = smul.u32 32, %s22
          %s235 = ssub.s32 2048, 2048
          %236 = vsyncadd %s229, %s235
          %s237 = smul.addr %s233, 64
          %s238 = scalar_lea.hbm %s1, %s237
          %s239 = sshll.u32 %s232, 4
          %s240 = int_to_ptr.vmem [resolvable:$true] %s239
          %245 = dma.hbm_to_vmem [thread:$0]  %s238, 2048, %s240, %s229, 64, 64, 4
        $region32: #{tpu_custom_call.1} parent=23 // pred_fallthru
          _
      $region24: #{tpu_custom_call.1} parent=5 // pred_fallthru
        _
      %p246 = scmp.le.s32.totalorder 1, %s22
      %p247 = scmp.lt.s32.totalorder %s22, 5
      %p248 = pnand %p246, %p247
      %p249 = pneg %p248
      // Predicated region
      $region33: #{tpu_custom_call.1} parent=5 // pred_check
        _
      $region34: #{tpu_custom_call.1} parent=5 // pred_check_branch
        %251 = sbr.rel (%p248) target = $region36
      $region35: #{tpu_custom_call.1} parent=5 // pred_region
        %s252 = ssub.s32 %s22, 1
        %s253 = sand.u32 %s35, 1
        %s254 = scalar_lea.sflag [#allocation4], %s253
        %s255 = sand.u32 %s35, 1
        %s256 = smul.addr %s255, 16
        %s257 = scalar_lea.vmem [#allocation3], %s256
        // Predicated region
        $region37: #{tpu_custom_call.1} parent=35 // pred_check
          %p258 = pneg %p48
        $region38: #{tpu_custom_call.1} parent=35 // pred_check_branch
          %260 = sbr.rel (%p258) target = $region40
        $region39: #{tpu_custom_call.1} parent=35 // pred_region
          %261 = dma.done %s254, 256
        $region40: #{tpu_custom_call.1} parent=35 // pred_fallthru
          _
        %s262 = sand.u32 %s61, 1
        %s263 = scalar_lea.sflag [#allocation8], %s262
        %s264 = sand.u32 %s61, 1
        %s265 = smul.addr %s264, 128
        %s266 = scalar_lea.vmem [#allocation7], %s265
        // Predicated region
        $region41: #{tpu_custom_call.1} parent=35 // pred_check
          %p267 = pneg %p74
        $region42: #{tpu_custom_call.1} parent=35 // pred_check_branch
          %269 = sbr.rel (%p267) target = $region44
        $region43: #{tpu_custom_call.1} parent=35 // pred_region
          %270 = dma.done %s263, 2048
        $region44: #{tpu_custom_call.1} parent=35 // pred_fallthru
          _
        %s271 = sand.u32 %s35, 1
        %s272 = scalar_lea.sflag [#allocation4], %s271
        %s273 = sand.u32 %s35, 1
        %s274 = smul.addr %s273, 16
        %s275 = scalar_lea.vmem [#allocation3], %s274
        %p276 = pneg %p48
        %p277 = pneg %p45
        %s278 = sand.u32 %s61, 1
        %s279 = scalar_lea.sflag [#allocation8], %s278
        %s280 = sand.u32 %s61, 1
        %s281 = smul.addr %s280, 128
        %s282 = scalar_lea.vmem [#allocation7], %s281
        %p283 = pneg %p74
        %p284 = pneg %p71
        %p285 = pneg %p95
        %p286 = pneg %p92
        %p287 = pneg %p116
        %p288 = pneg %p113
        %p289 = pneg %p137
        %p290 = pneg %p134
        %p291 = pneg %p158
        %p292 = pneg %p155
        %p293 = pneg %p179
        %p294 = pneg %p176
        %s295 = smul.u32 2, %s27
        %s296 = smul.u32 32, %s27
        %p298 = scmp.eq.s32.totalorder %s27, 0
        // Predicated region
        $region45: #{tpu_custom_call.1} parent=35 // pred_check
          %p299 = pneg %p298
        $region46: #{tpu_custom_call.1} parent=35 // pred_check_branch
          %301 = sbr.rel (%p299) target = $region48
        $region47: #{tpu_custom_call.1} parent=35 // pred_region
          %302 = vst [vmem:[#allocation2] sm:$0xff] 0.0
          %303 = vst [vmem:[#allocation2 + $0x8] sm:$0xff] 0.0
        $region48: #{tpu_custom_call.1} parent=35 // pred_fallthru
          _
        %v304 = vld [vmem:[#allocation2] sm:$0xff]
        %v305 = vld [vmem:[#allocation2 + $0x8] sm:$0xff]
        %v306 = vld [vmem:[%s257] sm:$0xff]
        %v307 = vld [vmem:[%s257 + $0x8] sm:$0xff]
        %v308 = vld [vmem:[%s266] sm:$0xf]
        %v309 = vld [vmem:[%s266 + $0x4] sm:$0xf]
        %v310 = vld [vmem:[%s266 + $0x8] sm:$0xf]
        %v311 = vld [vmem:[%s266 + $0xc] sm:$0xf]
        %v312 = vld [vmem:[%s266 + $0x10] sm:$0xf]
        %v313 = vld [vmem:[%s266 + $0x14] sm:$0xf]
        %v314 = vld [vmem:[%s266 + $0x18] sm:$0xf]
        %v315 = vld [vmem:[%s266 + $0x1c] sm:$0xf]
        %v316 = vld [vmem:[%s266 + $0x20] sm:$0xf]
        %v317 = vld [vmem:[%s266 + $0x24] sm:$0xf]
        %v318 = vld [vmem:[%s266 + $0x28] sm:$0xf]
        %v319 = vld [vmem:[%s266 + $0x2c] sm:$0xf]
        %v320 = vld [vmem:[%s266 + $0x30] sm:$0xf]
        %v321 = vld [vmem:[%s266 + $0x34] sm:$0xf]
        %v322 = vld [vmem:[%s266 + $0x38] sm:$0xf]
        %v323 = vld [vmem:[%s266 + $0x3c] sm:$0xf]
        %v324 = vld [vmem:[%s266 + $0x40] sm:$0xf]
        %v325 = vld [vmem:[%s266 + $0x44] sm:$0xf]
        %v326 = vld [vmem:[%s266 + $0x48] sm:$0xf]
        %v327 = vld [vmem:[%s266 + $0x4c] sm:$0xf]
        %v328 = vld [vmem:[%s266 + $0x50] sm:$0xf]
        %v329 = vld [vmem:[%s266 + $0x54] sm:$0xf]
        %v330 = vld [vmem:[%s266 + $0x58] sm:$0xf]
        %v331 = vld [vmem:[%s266 + $0x5c] sm:$0xf]
        %v332 = vld [vmem:[%s266 + $0x60] sm:$0xf]
        %v333 = vld [vmem:[%s266 + $0x64] sm:$0xf]
        %v334 = vld [vmem:[%s266 + $0x68] sm:$0xf]
        %v335 = vld [vmem:[%s266 + $0x6c] sm:$0xf]
        %v336 = vld [vmem:[%s266 + $0x70] sm:$0xf]
        %v337 = vld [vmem:[%s266 + $0x74] sm:$0xf]
        %v338 = vld [vmem:[%s266 + $0x78] sm:$0xf]
        %v339 = vld [vmem:[%s266 + $0x7c] sm:$0xf]
        %v342 = vunpack.c.l.b16 %v306
        %v343 = vunpack.c.h.b16 %v306
        %v344 = vunpack.c.l.b16 %v307
        %v345 = vunpack.c.h.b16 %v307
        %v346 = vpack.c.b16 %v344, %v342
        %v347 = vpack.c.b16 %v345, %v343
        %v382 = vunpack.c.l.b16 %v308
        %v383 = vunpack.c.l.b16 %v309
        %v384 = vunpack.c.l.b16 %v310
        %v385 = vunpack.c.l.b16 %v311
        %v386 = vunpack.c.l.b16 %v312
        %v387 = vunpack.c.l.b16 %v313
        %v388 = vunpack.c.l.b16 %v314
        %v389 = vunpack.c.l.b16 %v315
        %v390 = vunpack.c.l.b16 %v316
        %v391 = vunpack.c.l.b16 %v317
        %v392 = vunpack.c.l.b16 %v318
        %v393 = vunpack.c.l.b16 %v319
        %v394 = vunpack.c.l.b16 %v320
        %v395 = vunpack.c.l.b16 %v321
        %v396 = vunpack.c.l.b16 %v322
        %v397 = vunpack.c.l.b16 %v323
        %v398 = vunpack.c.l.b16 %v324
        %v399 = vunpack.c.l.b16 %v325
        %v400 = vunpack.c.l.b16 %v326
        %v401 = vunpack.c.l.b16 %v327
        %v402 = vunpack.c.l.b16 %v328
        %v403 = vunpack.c.l.b16 %v329
        %v404 = vunpack.c.l.b16 %v330
        %v405 = vunpack.c.l.b16 %v331
        %v406 = vunpack.c.l.b16 %v332
        %v407 = vunpack.c.l.b16 %v333
        %v408 = vunpack.c.l.b16 %v334
        %v409 = vunpack.c.l.b16 %v335
        %v410 = vunpack.c.l.b16 %v336
        %v411 = vunpack.c.l.b16 %v337
        %v412 = vunpack.c.l.b16 %v338
        %v413 = vunpack.c.l.b16 %v339
        %v414 = vpack.c.b16 %v383, %v382
        %v415 = vpack.c.b16 %v385, %v384
        %v416 = vpack.c.b16 %v387, %v386
        %v417 = vpack.c.b16 %v389, %v388
        %v418 = vpack.c.b16 %v391, %v390
        %v419 = vpack.c.b16 %v393, %v392
        %v420 = vpack.c.b16 %v395, %v394
        %v421 = vpack.c.b16 %v397, %v396
        %v422 = vpack.c.b16 %v399, %v398
        %v423 = vpack.c.b16 %v401, %v400
        %v424 = vpack.c.b16 %v403, %v402
        %v425 = vpack.c.b16 %v405, %v404
        %v426 = vpack.c.b16 %v407, %v406
        %v427 = vpack.c.b16 %v409, %v408
        %v428 = vpack.c.b16 %v411, %v410
        %v429 = vpack.c.b16 %v413, %v412
        %446 = vmatprep.subr.bf16.mxu0 0
        %447 = vmatpush1.bf16.msra.mxu0 %v414
        %448 = vmatprep.subr.bf16.mxu0 0
        %449 = vmatpush1.bf16.msra.mxu0 %v415
        %450 = vmatprep.subr.bf16.mxu0 0
        %451 = vmatpush1.bf16.msra.mxu0 %v416
        %452 = vmatprep.subr.bf16.mxu0 0
        %453 = vmatpush1.bf16.msra.mxu0 %v417
        %454 = vmatprep.subr.bf16.mxu0 0
        %455 = vmatpush1.bf16.msra.mxu0 %v418
        %456 = vmatprep.subr.bf16.mxu0 0
        %457 = vmatpush1.bf16.msra.mxu0 %v419
        %458 = vmatprep.subr.bf16.mxu0 0
        %459 = vmatpush1.bf16.msra.mxu0 %v420
        %460 = vmatprep.subr.bf16.mxu0 0
        %461 = vmatpush1.bf16.msra.mxu0 %v421
        %462 = vmatprep.subr.bf16.mxu0 0
        %463 = vmatpush1.bf16.msra.mxu0 %v422
        %464 = vmatprep.subr.bf16.mxu0 0
        %465 = vmatpush1.bf16.msra.mxu0 %v423
        %466 = vmatprep.subr.bf16.mxu0 0
        %467 = vmatpush1.bf16.msra.mxu0 %v424
        %468 = vmatprep.subr.bf16.mxu0 0
        %469 = vmatpush1.bf16.msra.mxu0 %v425
        %470 = vmatprep.subr.bf16.mxu0 0
        %471 = vmatpush1.bf16.msra.mxu0 %v426
        %472 = vmatprep.subr.bf16.mxu0 0
        %473 = vmatpush1.bf16.msra.mxu0 %v427
        %474 = vmatprep.subr.bf16.mxu0 0
        %475 = vmatpush1.bf16.msra.mxu0 %v428
        %476 = vmatprep.subr.bf16.mxu0 0
        %477 = vmatpush1.bf16.msra.mxu0 %v429
        %478 = vmatprep.mubr.bf16.mxu0 %v347
        %479 = vmatmul.mubr.bf16.gmra.mrb[0].mxu0 %v346
        %v480 = vpop.f32.mrb[0].mxu0
        %v481 = vadd.f32 0.0, %v480
        %v482 = vpop.f32.mrb[0].mxu0
        %v483 = vpop.f32.mrb[0].mxu0
        %v484 = vadd.f32 0.0, %v483
        %v485 = vpop.f32.mrb[0].mxu0
        %486 = vdwg.mxu0
        %v487 = vadd.f32 %v304, %v481
        %v488 = vadd.f32 %v305, %v484
        %489 = vst [vmem:[#allocation2] sm:$0xff] %v487
        %490 = vst [vmem:[#allocation2 + $0x8] sm:$0xff] %v488
        %p491 = scmp.eq.s32.totalorder %s27, 3
        // Predicated region
        $region49: #{tpu_custom_call.1} parent=35 // pred_check
          %p492 = pneg %p491
        $region50: #{tpu_custom_call.1} parent=35 // pred_check_branch
          %494 = sbr.rel (%p492) target = $region52
        $region51: #{tpu_custom_call.1} parent=35 // pred_region
          %v495 = vld [vmem:[#allocation2] sm:$0xff]
          %v496 = vld [vmem:[#allocation2 + $0x8] sm:$0xff]
          %v497 = vld [vmem:[%s2] sm:$0x1]
          %v499 = vlaneseq
          %v500 = vshrl.u32 %v499, 7
          %v501 = vsub.s32 0, %v500
          %v502 = vrot.slane %v497, %v501
          %v504 = vadd.f32 %v495, %v502
          %v505 = vadd.f32 %v496, %v502
          %506 = vst [vmem:[#allocation9] sm:$0xff] %v504
          %507 = vst [vmem:[#allocation9 + $0x8] sm:$0xff] %v505
          %v508 = vld [vmem:[%s3] sm:$0xff]
          %v509 = vld [vmem:[%s3 + $0x8] sm:$0xff]
          %v510 = vlaneseq
          %v511 = vand.u32 %v510, 127
          %v512 = vlaneseq
          %v513 = vshrl.u32 %v512, 7
          %v514 = vadd.s32 %v513, 8
          %vm515 = vcmp.lt.s32.totalorder %v513, 2
          %vm516 = vcmp.lt.s32.totalorder %v514, 2
          %vm517 = vcmp.lt.s32.totalorder %v511, 32
          %vm518 = vmand %vm515, %vm517
          %vm519 = vmand %vm516, %vm517
          %520 = vset.pattern.permute.xlu0 0
          %521 = vperm.xlu0 %520, %v508
          %v522 = vpop.permute.xlu0 %521
          %523 = vset.pattern.permute.xlu0 0
          %524 = vperm.xlu0 %523, %v509
          %v525 = vpop.permute.xlu0 %524
          %vm526 = vcmp.eq.s32.totalorder %v511, %v522
          %vm527 = vcmp.eq.s32.totalorder %v511, %v525
          %v528 = vsel %vm526, 1, 0
          %v529 = vsel %vm527, 1, 0
          %v530 = vcvt.s32.f32 %v528
          %v531 = vcvt.s32.f32 %v529
          %v532 = vsub.f32 %v504, %v530
          %v533 = vsub.f32 %v505, %v531
          %v534 = vmul.f32 %v532, %v532
          %v535 = vmul.f32 %v533, %v533
          %v536 = vsel %vm518, %v534, 0.0
          %v537 = vsel %vm519, %v535, 0.0
          %538 = vadd.xlane.f32.xlu0 %v536
          %v539 = vpop.xlane.xlu0 %538
          %540 = vadd.xlane.f32.xlu0 %v537
          %v541 = vpop.xlane.xlu0 %540
          %v542 = vadd.f32 %v539, %v541
          %v543 = vrot.slane %v542, 4
          %v544 = vadd.f32 %v542, %v543
          %v545 = vrot.slane %v544, 2
          %v546 = vadd.f32 %v544, %v545
          %v547 = vrot.slane %v546, 1
          %v548 = vadd.f32 %v546, %v547
          %v549 = vmul.f32 %v548, 0.015625
          %s550 = vtos %v549
          %s551 = scalar_lea.smem [#allocation10], 0
          %552 = sst [smem:[%s551]] %s550
          %v553 = vsel %vm517, %v504, -inf
          %v554 = vsel %vm517, %v505, -inf
          %555 = vmax.xlane.f32.xlu0 %v553
          %v556 = vpop.xlane.xlu0 %555
          %557 = vmax.xlane.f32.xlu0 %v554
          %v558 = vpop.xlane.xlu0 %557
          %vm559 = vcmp.eq.f32.partialorder %v553, %v556
          %vm560 = vcmp.eq.f32.partialorder %v554, %v558
          %v561 = vsel %vm559, %v511, 128
          %v562 = vsel %vm560, %v511, 128
          %v563 = vand.u32 %v561, 65535
          %v564 = vshra.s32 %v561, 16
          %v565 = vcvt.s32.f32 %v563
          %v566 = vcvt.s32.f32 %v564
          %567 = vmin.xlane.f32.xlu0 %v566
          %v568 = vpop.xlane.xlu0 %567
          %vm569 = vcmp.eq.f32.partialorder %v566, %v568
          %v570 = vsel %vm569, %v565, inf
          %571 = vmin.xlane.f32.xlu0 %v570
          %v572 = vpop.xlane.xlu0 %571
          %v573 = vcvt.f32.s32 %v572
          %v574 = vcvt.f32.s32 %v568
          %v575 = vshll.u32 %v574, 16
          %v576 = vadd.s32 %v575, %v573
          %v577 = vand.u32 %v562, 65535
          %v578 = vshra.s32 %v562, 16
          %v579 = vcvt.s32.f32 %v577
          %v580 = vcvt.s32.f32 %v578
          %581 = vmin.xlane.f32.xlu0 %v580
          %v582 = vpop.xlane.xlu0 %581
          %vm583 = vcmp.eq.f32.partialorder %v580, %v582
          %v584 = vsel %vm583, %v579, inf
          %585 = vmin.xlane.f32.xlu0 %v584
          %v586 = vpop.xlane.xlu0 %585
          %v587 = vcvt.f32.s32 %v586
          %v588 = vcvt.f32.s32 %v582
          %v589 = vshll.u32 %v588, 16
          %v590 = vadd.s32 %v589, %v587
          %vm591 = vcmp.eq.s32.totalorder %v576, %v508
          %vm592 = vcmp.eq.s32.totalorder %v590, %v509
          %vm593 = vmand %vm591, %vm515
          %vm594 = vmand %vm592, %vm516
          %v595 = vsel %vm593, 1, 0
          %v596 = vsel %vm594, 1, 0
          %v597 = vcvt.s32.f32 %v595
          %v598 = vcvt.s32.f32 %v596
          %vm599 = vcmask 7168
          %v600 = vsel %vm599, %v597, 0.0
          %v601 = vsel %vm599, %v598, 0.0
          %v602 = vadd.f32 %v600, %v601
          %v603 = vrot.slane %v602, 4
          %v604 = vadd.f32 %v602, %v603
          %v605 = vrot.slane %v604, 2
          %v606 = vadd.f32 %v604, %v605
          %v607 = vrot.slane %v606, 1
          %v608 = vadd.f32 %v606, %v607
          %v609 = vmul.f32 %v608, 0.5
          %s610 = vtos %v609
          %s611 = scalar_lea.smem [#allocation11], 0
          %612 = sst [smem:[%s611]] %s610
        $region52: #{tpu_custom_call.1} parent=35 // pred_fallthru
          _
        // Predicated region
        $region53: #{tpu_custom_call.1} parent=35 // pred_check
          %p613 = pneg %p134
        $region54: #{tpu_custom_call.1} parent=35 // pred_check_branch
          %615 = sbr.rel (%p613) target = $region56
        $region55: #{tpu_custom_call.1} parent=35 // pred_region
          %s617 = ssub.s32 256, 256
          %618 = vsyncadd [#allocation5], %s617
          %s619 = sshll.u32 [#allocation9], 4
          %s620 = int_to_ptr.vmem [resolvable:$true] %s619
          %625 = dma.vmem_to_hbm [thread:$0]  %s620, 256, %s4, [#allocation5], 128, 128, 8
        $region56: #{tpu_custom_call.1} parent=35 // pred_fallthru
          _
        // Predicated region
        $region57: #{tpu_custom_call.1} parent=35 // pred_check
          %p626 = pneg %p155
        $region58: #{tpu_custom_call.1} parent=35 // pred_check_branch
          %628 = sbr.rel (%p626) target = $region60
        $region59: #{tpu_custom_call.1} parent=35 // pred_region
          %s630 = ssub.s32 16, 16
          %631 = vsyncadd [#allocation6], %s630
          %634 = dma.smem_to_hbm [#allocation10], 16, %s5, [#allocation6]
        $region60: #{tpu_custom_call.1} parent=35 // pred_fallthru
          _
        // Predicated region
        $region61: #{tpu_custom_call.1} parent=35 // pred_check
          %p635 = pneg %p176
        $region62: #{tpu_custom_call.1} parent=35 // pred_check_branch
          %637 = sbr.rel (%p635) target = $region64
        $region63: #{tpu_custom_call.1} parent=35 // pred_region
          %s639 = ssub.s32 16, 16
          %640 = vsyncadd [#allocation12], %s639
          %643 = dma.smem_to_hbm [#allocation11], 16, %s6, [#allocation12]
        $region64: #{tpu_custom_call.1} parent=35 // pred_fallthru
          _
        // Predicated region
        $region65: #{tpu_custom_call.1} parent=35 // pred_check
          %p644 = pneg %p134
        $region66: #{tpu_custom_call.1} parent=35 // pred_check_branch
          %646 = sbr.rel (%p644) target = $region68
        $region67: #{tpu_custom_call.1} parent=35 // pred_region
          %647 = dma.done [#allocation5], 256
        $region68: #{tpu_custom_call.1} parent=35 // pred_fallthru
          _
        // Predicated region
        $region69: #{tpu_custom_call.1} parent=35 // pred_check
          %p648 = pneg %p155
        $region70: #{tpu_custom_call.1} parent=35 // pred_check_branch
          %650 = sbr.rel (%p648) target = $region72
        $region71: #{tpu_custom_call.1} parent=35 // pred_region
          %651 = dma.done [#allocation6], 16
        $region72: #{tpu_custom_call.1} parent=35 // pred_fallthru
          _
        // Predicated region
        $region73: #{tpu_custom_call.1} parent=35 // pred_check
          %p652 = pneg %p176
        $region74: #{tpu_custom_call.1} parent=35 // pred_check_branch
          %654 = sbr.rel (%p652) target = $region76
        $region75: #{tpu_custom_call.1} parent=35 // pred_region
          %655 = dma.done [#allocation12], 16
        $region76: #{tpu_custom_call.1} parent=35 // pred_fallthru
          _
        %656 = sfence
      $region36: #{tpu_custom_call.1} parent=5 // pred_fallthru
        _
      %p657 = scmp.le.s32.totalorder 2, %s22
      // Predicated region
      $region77: #{tpu_custom_call.1} parent=5 // pred_check
        %p658 = pneg %p657
      $region78: #{tpu_custom_call.1} parent=5 // pred_check_branch
        %660 = sbr.rel (%p658) target = $region80
      $region79: #{tpu_custom_call.1} parent=5 // pred_region
        %s661 = ssub.s32 %s22, 2
      $region80: #{tpu_custom_call.1} parent=5 // pred_fallthru
        _
    $region6: #{tpu_custom_call.1} parent=1 // loop_footer
      %s26 = sadd.s32 1, %s22
    $region7: #{tpu_custom_call.1} parent=1 // loop_footer_branch
      %21 = sbr.rel target = $region3
    $region8: #{tpu_custom_call.1} parent=1 // loop_exit
      _
    %662 = vsyncpa [#allocation4], 1
    %s663 = scalar_lea.sflag [#allocation4], 1
    %664 = vsyncpa %s663, 1
    %665 = vsyncpa [#allocation8], 1
    %s666 = scalar_lea.sflag [#allocation8], 1
    %667 = vsyncpa %s666, 1
    %668 = vsyncpa [#allocation5], 1
    %s669 = scalar_lea.sflag [#allocation5], 1
    %670 = vsyncpa %s669, 1
    %671 = vsyncpa [#allocation6], 1
    %s672 = scalar_lea.sflag [#allocation6], 1
    %673 = vsyncpa %s672, 1
    %674 = vsyncpa [#allocation12], 1

</llo_original>
